<compile_context>
chip_gen: v7x
topology: tpu7x:2x2x1
jax: 0.10.0
libtpu: 0.0.40
codegen_flags: <defaults>
</compile_context>

<pallas_src>
import functools

import jax
import jax.numpy as jnp
from jax import lax
from jax.experimental import pallas as pl
from jax.experimental.pallas import tpu as pltpu


def _latex_init_decoder_kernel(enc_ref, w_ref, b_ref, out_ref, sum_ref, *,
                               inv_len, valid_tail):
    """Grid = (batch blocks ["parallel"], sequence tiles ["arbitrary"]).

    enc_ref : (Bt, TL, D)  current activation tile
    w_ref   : (D, 3H)      fused weights (resident, constant index_map)
    b_ref   : (1, 3H)      fused biases  (resident)
    out_ref : (Bt, 3H)     fused output  (written on the last sequence step)
    sum_ref : (Bt, D) f32  VMEM scratch accumulator for the sequence sum
    valid_tail : None if every tile is full, else the number of valid rows in
                 the ragged final sequence tile (static Python int).
    """
    step = pl.program_id(1)
    last = pl.num_programs(1) - 1

    @pl.when(step == 0)
    def _init():
        sum_ref[...] = jnp.zeros_like(sum_ref)

    def _accumulate_full():
        # f32 accumulation with the cast folded into the reduce (no full-tile
        # f32 materialization of the activations).
        sum_ref[...] += jnp.sum(enc_ref[...], axis=1, dtype=jnp.float32)

    if valid_tail is None:
        _accumulate_full()
    else:
        @pl.when(step != last)
        def _full():
            _accumulate_full()

        @pl.when(step == last)
        def _ragged():
            # Mask the unspecified out-of-bounds rows of the ragged last block.
            x = enc_ref[...]
            pos = lax.broadcasted_iota(jnp.int32, x.shape, 1)
            x = jnp.where(pos < valid_tail, x, jnp.zeros_like(x))
            sum_ref[...] += jnp.sum(x, axis=1, dtype=jnp.float32)

    @pl.when(step == last)
    def _finalize():
        mean_enc = sum_ref[...] * inv_len                       # (Bt, D), f32
        w = w_ref[...]                                          # native dtype
        # bf16 weights take the MXU-native path (f32 accumulation); see header.
        lhs = mean_enc if w.dtype == jnp.float32 else mean_enc.astype(w.dtype)
        y = jnp.dot(lhs, w, preferred_element_type=jnp.float32)   # (Bt, 3H)
        y = jnp.tanh(y + b_ref[...].astype(jnp.float32))
        out_ref[...] = y.astype(out_ref.dtype)                  # one lane-dense store


def fuse_latex_init_params(wh, wc, wo, bh, bc, bo):
    """Fuse the three Linear layers ONCE at parameter-setup time.

    w*: (D, H) (already transposed vs. torch Linear weight), b*: (H,).
    Returns (w_fused (D, 3H), b_fused (1, 3H)).  Hoisting this out of the
    per-call path avoids an extra HBM write+read of D x 3H every forward.
    """
    w_fused = jnp.concatenate([wh, wc, wo], axis=1)
    b_fused = jnp.concatenate([bh, bc, bo]).reshape(1, -1)
    return w_fused, b_fused


def _tpu_vmem_capacity_bytes():
    try:
        return int(pltpu.get_tpu_info().vmem_capacity_bytes)
    except Exception:
        return 64 << 20  # conservative fallback (v7x per-core VMEM)


def _sublane_align(itemsize):
    # f32 -> 8, bf16 -> 16, int8/fp8 -> 32 rows per packed sublane group.
    return 8 * max(1, 4 // max(1, itemsize))


def _choose_batch_tile(B):
    """Split the batch into multiple-of-8 blocks when B >= 16 (megacore/v7x)."""
    if B < 16:
        return B
    for nb in (2, 4):
        if B % nb == 0 and (B // nb) % 8 == 0:
            return B // nb
    return B


def _choose_seq_tile(b_tile, L, D, itemsize, target_bytes):
    """Largest dtype-aligned sequence tile whose (Bt, TL, D) block fits budget.

    No 'must divide L' requirement: ragged final blocks are masked in-kernel.
    """
    align = _sublane_align(itemsize)
    row_bytes = max(1, b_tile * D * itemsize)
    cap = max(1, target_bytes // row_bytes)
    if L <= cap:
        return L                          # whole sequence in one block
    tile = (cap // align) * align
    if tile == 0:
        tile = align                      # pathological shapes: keep alignment
    return min(tile, L)


def latex_init_decoder_fused(enc_out, w_fused, b_fused, *, seq_tile=None,
                             batch_tile=None, out_dtype=None):
    """enc_out: (B, L, D); w_fused: (D, 3H); b_fused: (1, 3H).

    Returns ((h, c), o), each (B, H), matching LatexInitDecoder.forward.
    """
    B, L, D = enc_out.shape
    H3 = w_fused.shape[1]
    H = H3 // 3
    out_dtype = enc_out.dtype if out_dtype is None else out_dtype
    itemsize = enc_out.dtype.itemsize
    align = _sublane_align(itemsize)

    # Generation-aware budgets (review item 1).
    vmem_cap = _tpu_vmem_capacity_bytes()
    if vmem_cap >= (100 << 20):           # v5e / v6e: 128 MiB VMEM
        act_budget, limit_cap = 16 << 20, 96 << 20
    else:                                 # v7x: 64 MiB VMEM per TensorCore
        act_budget, limit_cap = 10 << 20, 48 << 20

    # Batch blocking ("parallel" axis). Block must divide B evenly.
    if batch_tile is None:
        b_tile = _choose_batch_tile(B)
    else:
        b_tile = max(1, min(int(batch_tile), B))
    if B % b_tile != 0:
        b_tile = B

    # Sequence tiling ("arbitrary" reduction axis).
    if seq_tile is None:
        seq_tile = _choose_seq_tile(b_tile, L, D, itemsize, act_budget)
    else:
        seq_tile = max(1, min(int(seq_tile), L))
        if seq_tile < L:                  # keep (8,128)-legal: round up to align
            seq_tile = min(L, ((seq_tile + align - 1) // align) * align)

    n_b = B // b_tile
    n_l = pl.cdiv(L, seq_tile)
    rem = L % seq_tile
    valid_tail = rem if rem != 0 else None    # rem != 0  =>  n_l >= 2 (ragged)

    # Derived VMEM limit: 2x double-buffered activation tiles + 2x resident
    # weights/bias/output buffers + f32 scratch + compiler headroom.
    tile_bytes = b_tile * seq_tile * D * itemsize
    w_bytes = D * H3 * w_fused.dtype.itemsize
    bias_bytes = 8 * H3 * b_fused.dtype.itemsize           # sublane-padded
    out_bytes = max(b_tile, 8) * H3 * jnp.dtype(out_dtype).itemsize
    scratch_bytes = max(b_tile, 8) * D * 4
    derived = (2 * tile_bytes + 2 * w_bytes + 2 * bias_bytes
               + 2 * out_bytes + scratch_bytes + (4 << 20))
    vmem_limit = int(min(max(derived, 16 << 20), limit_cap))

    grid_spec = pltpu.PrefetchScalarGridSpec(
        num_scalar_prefetch=0,
        grid=(n_b, n_l),
        in_specs=[
            # Batch/sequence-tiled activations.
            pl.BlockSpec((b_tile, seq_tile, D), lambda b, l: (b, l, 0)),
            # Weights / biases resident (constant index_map -> DMA'd once).
            pl.BlockSpec((D, H3), lambda b, l: (0, 0)),
            pl.BlockSpec((1, H3), lambda b, l: (0, 0)),
        ],
        # Output block constant across the sequence axis -> resident; written
        # once on the final reduction step per batch block.
        out_specs=pl.BlockSpec((b_tile, H3), lambda b, l: (b, 0)),
        scratch_shapes=[pltpu.VMEM((b_tile, D), jnp.float32)],
    )

    kernel = functools.partial(_latex_init_decoder_kernel,
                               inv_len=1.0 / float(L),
                               valid_tail=valid_tail)

    hco = pl.pallas_call(
        kernel,
        out_shape=jax.ShapeDtypeStruct((B, H3), out_dtype),
        grid_spec=grid_spec,
        compiler_params=pltpu.CompilerParams(
            dimension_semantics=("parallel", "arbitrary"),
            vmem_limit_bytes=vmem_limit,
        ),
    )(enc_out, w_fused, b_fused)

    h = hco[:, :H]
    c = hco[:, H:2 * H]
    o = hco[:, 2 * H:]
    return (h, c), o


def latex_init_decoder(enc_out, wh, wc, wo, bh, bc, bo, **kwargs):
    """Convenience wrapper.  Prefer fuse_latex_init_params() at setup time +
    latex_init_decoder_fused() per call so the concat is not re-run per call."""
    w_fused, b_fused = fuse_latex_init_params(wh, wc, wo, bh, bc, bo)
    return latex_init_decoder_fused(enc_out, w_fused, b_fused, **kwargs)


def _init_params(key, enc_out_dim, dec_rnn_h, dtype=jnp.float32):
    """Deterministic synthetic init (shapes match nn.Linear(enc_out_dim, dec_rnn_h))."""
    ks = jax.random.split(key, 6)
    scale = 1.0 / jnp.sqrt(enc_out_dim)
    wh = jax.random.uniform(ks[0], (enc_out_dim, dec_rnn_h), dtype, -scale, scale)
    wc = jax.random.uniform(ks[1], (enc_out_dim, dec_rnn_h), dtype, -scale, scale)
    wo = jax.random.uniform(ks[2], (enc_out_dim, dec_rnn_h), dtype, -scale, scale)
    bh = jax.random.uniform(ks[3], (dec_rnn_h,), dtype, -scale, scale)
    bc = jax.random.uniform(ks[4], (dec_rnn_h,), dtype, -scale, scale)
    bo = jax.random.uniform(ks[5], (dec_rnn_h,), dtype, -scale, scale)
    return wh, wc, wo, bh, bc, bo


def _reference(enc_out, wh, wc, wo, bh, bc, bo):
    mean_enc = enc_out.astype(jnp.float32).mean(axis=1)
    f32 = lambda a: a.astype(jnp.float32)
    h = jnp.tanh(mean_enc @ f32(wh) + f32(bh))
    c = jnp.tanh(mean_enc @ f32(wc) + f32(bc))
    o = jnp.tanh(mean_enc @ f32(wo) + f32(bo))
    return h, c, o


if __name__ == "__main__":
    B, L = 8, 8
    enc_out_dim, dec_rnn_h = 256, 256

    key = jax.random.PRNGKey(0)
    k_x, k_p, k_x2, k_x3 = jax.random.split(key, 4)
    enc_out = jax.random.normal(k_x, (B, L, enc_out_dim), jnp.float32)
    wh, wc, wo, bh, bc, bo = _init_params(k_p, enc_out_dim, dec_rnn_h)
    # Fusion hoisted out of the per-call path (done once at setup).
    w_fused, b_fused = fuse_latex_init_params(wh, wc, wo, bh, bc, bo)

    # --- 1) single-tile path (grid = (1, 1)) ---------------------------------
    (h, c), o = jax.jit(latex_init_decoder_fused)(enc_out, w_fused, b_fused)
    jax.block_until_ready((h, c, o))
    h_ref, c_ref, o_ref = _reference(enc_out, wh, wc, wo, bh, bc, bo)
    assert jnp.allclose(h, h_ref, atol=1e-5), "h mismatch"
    assert jnp.allclose(c, c_ref, atol=1e-5), "c mismatch"
    assert jnp.allclose(o, o_ref, atol=1e-5), "o mismatch"

    # --- 2) tiled reduction with a RAGGED final block (36 = 16 + 16 + 4) -----
    L2 = 36
    enc_out2 = jax.random.normal(k_x2, (B, L2, enc_out_dim), jnp.float32)
    (h2, c2), o2 = jax.jit(
        functools.partial(latex_init_decoder_fused, seq_tile=16)
    )(enc_out2, w_fused, b_fused)
    jax.block_until_ready((h2, c2, o2))
    h2_ref, c2_ref, o2_ref = _reference(enc_out2, wh, wc, wo, bh, bc, bo)
    assert jnp.allclose(h2, h2_ref, atol=1e-5), "h mismatch (ragged tiled)"
    assert jnp.allclose(c2, c2_ref, atol=1e-5), "c mismatch (ragged tiled)"
    assert jnp.allclose(o2, o2_ref, atol=1e-5), "o mismatch (ragged tiled)"

    # --- 3) bf16-weight path (MXU-native inputs, f32 accumulation) ------------
    to_bf16 = lambda a: a.astype(jnp.bfloat16)
    wbf, bbf = fuse_latex_init_params(to_bf16(wh), to_bf16(wc), to_bf16(wo),
                                      to_bf16(bh), to_bf16(bc), to_bf16(bo))
    (h3, c3), o3 = jax.jit(latex_init_decoder_fused)(enc_out, wbf, bbf)
    jax.block_until_ready((h3, c3, o3))
    assert jnp.allclose(h3, h_ref, atol=2e-2), "h mismatch (bf16 weights)"
    assert jnp.allclose(c3, c_ref, atol=2e-2), "c mismatch (bf16 weights)"
    assert jnp.allclose(o3, o_ref, atol=2e-2), "o mismatch (bf16 weights)"

    # --- 4) batch-parallel path (B=16 -> two (8, ...) batch blocks) ----------
    B2, L3 = 16, 32
    enc_out3 = jax.random.normal(k_x3, (B2, L3, enc_out_dim), jnp.float32)
    (h4, c4), o4 = jax.jit(
        functools.partial(latex_init_decoder_fused, seq_tile=8)
    )(enc_out3, w_fused, b_fused)
    jax.block_until_ready((h4, c4, o4))
    h4_ref, c4_ref, o4_ref = _reference(enc_out3, wh, wc, wo, bh, bc, bo)
    assert jnp.allclose(h4, h4_ref, atol=1e-5), "h mismatch (batch-parallel)"
    assert jnp.allclose(c4, c4_ref, atol=1e-5), "c mismatch (batch-parallel)"
    assert jnp.allclose(o4, o4_ref, atol=1e-5), "o mismatch (batch-parallel)"

    print("KERNEL_OK")
</pallas_src>

<mosaic_0001>
module attributes {stable_mosaic.version = 11 : i64} {
  func.func @_latex_init_decoder_kernel(%arg0: i32, %arg1: i32, %arg2: memref<8x8x256xf32, #tpu.memory_space<vmem>>, %arg3: memref<256x768xf32, #tpu.memory_space<vmem>>, %arg4: memref<1x768xf32, #tpu.memory_space<vmem>>, %arg5: memref<8x768xf32, #tpu.memory_space<vmem>>, %arg6: memref<8x256xf32, #tpu.memory_space<vmem>>) attributes {dimension_semantics = [#tpu.dimension_semantics<parallel>, #tpu.dimension_semantics<arbitrary>], iteration_bounds = array<i64: 1, 1>, scalar_prefetch = 0 : i64, scratch_operands = 1 : i64, tpu.core_type = #tpu.core_type<tc>, window_params = [{transform_indices = @transform_0, window_bounds = array<i64: 8, 8, 256>}, {pipeline_mode = #tpu.pipeline_mode<synchronous>, transform_indices = @transform_1, window_bounds = array<i64: 256, 768>}, {pipeline_mode = #tpu.pipeline_mode<synchronous>, transform_indices = @transform_2, window_bounds = array<i64: 1, 768>}, {transform_indices = @transform_3, window_bounds = array<i64: 8, 768>}]} {
    %c0_i32 = arith.constant 0 : i32
    %0 = arith.cmpi eq, %arg1, %c0_i32 : i32
    %1 = arith.extui %0 : i1 to i32
    %c0_i32_0 = arith.constant 0 : i32
    %2 = arith.cmpi ne, %1, %c0_i32_0 : i32
    scf.if %2 {
      %cst_9 = arith.constant 0.000000e+00 : f32
      %11 = vector.broadcast %cst_9 : f32 to vector<8x256xf32>
      %c0_10 = arith.constant 0 : index
      %c0_11 = arith.constant 0 : index
      %12 = vector.load %arg6[%c0_10, %c0_11] : memref<8x256xf32, #tpu.memory_space<vmem>>, vector<8x256xf32>
      tpu.vector_store %arg6[%c0_10, %c0_11], %11 {strides = array<i32>} : memref<8x256xf32, #tpu.memory_space<vmem>>, vector<8x256xf32>,
    } else {
    }
    %c0 = arith.constant 0 : index
    %c0_1 = arith.constant 0 : index
    %3 = vector.load %arg6[%c0, %c0_1] : memref<8x256xf32, #tpu.memory_space<vmem>>, vector<8x256xf32>
    %c0_2 = arith.constant 0 : index
    %c0_3 = arith.constant 0 : index
    %c0_4 = arith.constant 0 : index
    %4 = vector.load %arg2[%c0_2, %c0_3, %c0_4] : memref<8x8x256xf32, #tpu.memory_space<vmem>>, vector<8x8x256xf32>
    %cst = arith.constant dense<0.000000e+00> : vector<8x256xf32>
    %5 = vector.multi_reduction <add>, %4, %cst [1] : vector<8x8x256xf32> to vector<8x256xf32>
    %6 = arith.addf %3, %5 : vector<8x256xf32>
    %c0_5 = arith.constant 0 : index
    %c0_6 = arith.constant 0 : index
    %7 = vector.load %arg6[%c0_5, %c0_6] : memref<8x256xf32, #tpu.memory_space<vmem>>, vector<8x256xf32>
    tpu.vector_store %arg6[%c0_5, %c0_6], %6 {strides = array<i32>} : memref<8x256xf32, #tpu.memory_space<vmem>>, vector<8x256xf32>,
    %c0_i32_7 = arith.constant 0 : i32
    %8 = arith.cmpi eq, %arg1, %c0_i32_7 : i32
    %9 = arith.extui %8 : i1 to i32
    %c0_i32_8 = arith.constant 0 : i32
    %10 = arith.cmpi ne, %9, %c0_i32_8 : i32
    scf.if %10 {
      %c0_9 = arith.constant 0 : index
      %c0_10 = arith.constant 0 : index
      %11 = vector.load %arg6[%c0_9, %c0_10] : memref<8x256xf32, #tpu.memory_space<vmem>>, vector<8x256xf32>
      %cst_11 = arith.constant 1.250000e-01 : f32
      %12 = vector.broadcast %cst_11 : f32 to vector<8x256xf32>
      %13 = arith.mulf %11, %12 : vector<8x256xf32>
      %c0_12 = arith.constant 0 : index
      %c0_13 = arith.constant 0 : index
      %14 = vector.load %arg3[%c0_12, %c0_13] : memref<256x768xf32, #tpu.memory_space<vmem>>, vector<256x768xf32>
      %cst_14 = arith.constant dense<0.000000e+00> : vector<8x768xf32>
      %15 = tpu.matmul %13, %14, %cst_14 {dimension_numbers = #tpu.dot_dimension_numbers<[1], [0], [0], [1], [0, 0, 1, 1], [], []>} : vector<8x256xf32>, vector<256x768xf32>, vector<8x768xf32> -> vector<8x768xf32>
      %c0_15 = arith.constant 0 : index
      %c0_16 = arith.constant 0 : index
      %16 = vector.load %arg4[%c0_15, %c0_16] : memref<1x768xf32, #tpu.memory_space<vmem>>, vector<1x768xf32>
      %17 = vector.broadcast %16 : vector<1x768xf32> to vector<8x768xf32>
      %18 = arith.addf %15, %17 : vector<8x768xf32>
      %19 = math.tanh %18 : vector<8x768xf32>
      %c0_17 = arith.constant 0 : index
      %c0_18 = arith.constant 0 : index
      %20 = vector.load %arg5[%c0_17, %c0_18] : memref<8x768xf32, #tpu.memory_space<vmem>>, vector<8x768xf32>
      tpu.vector_store %arg5[%c0_17, %c0_18], %19 {strides = array<i32>} : memref<8x768xf32, #tpu.memory_space<vmem>>, vector<8x768xf32>,
    } else {
    }
    return
  }
  func.func @transform_0(%arg0: i32, %arg1: i32) -> (i32, i32, i32) {
    %c0_i32 = arith.constant 0 : i32
    %c0_i32_0 = arith.constant 0 : i32
    return %arg0, %arg1, %c0_i32 : i32, i32, i32
  }
  func.func @transform_1(%arg0: i32, %arg1: i32) -> (i32, i32) {
    %c0_i32 = arith.constant 0 : i32
    %c0_i32_0 = arith.constant 0 : i32
    %c0_i32_1 = arith.constant 0 : i32
    return %c0_i32, %c0_i32_0 : i32, i32
  }
  func.func @transform_2(%arg0: i32, %arg1: i32) -> (i32, i32) {
    %c0_i32 = arith.constant 0 : i32
    %c0_i32_0 = arith.constant 0 : i32
    %c0_i32_1 = arith.constant 0 : i32
    return %c0_i32, %c0_i32_0 : i32, i32
  }
  func.func @transform_3(%arg0: i32, %arg1: i32) -> (i32, i32) {
    %c0_i32 = arith.constant 0 : i32
    %c0_i32_0 = arith.constant 0 : i32
    return %arg0, %c0_i32 : i32, i32
  }
}

</mosaic_0001>

<llo_original>
// kernel: latex_init_decoder_fused.1
$region0: #{latex_init_decoder_fused.1}
  #allocation0 [shape = 'u32[]', space=smem, size = 0x4, offset = 0x4, fixed_abs, tag = 'smem constant byte address 0x4 - core index']
  #allocation1 [shape = 'u32[144,128]{1,0:T(1,128)}', space=vmem, size = 0x12000, scoped, tag = 'internal scratch']
  #allocation2 [shape = 'f32[8,256]{1,0:T(8,128)}', space=vmem, size = 0x2000, scoped, tag = 'scratch operand']
  %s0 = inlined_call_operand.hbm [shape: f32[8,8,256], index: 0, kind: input, shape index: {}]
  %s1 = inlined_call_operand.hbm [shape: f32[256,768], index: 1, kind: input, shape index: {}]
  %s2 = inlined_call_operand.vmem [shape: f32[1,768], index: 2, kind: input, shape index: {}]
  %s3 = inlined_call_operand.vmem [shape: f32[8,768], index: 3, kind: output, shape index: {}]
  %s4 = sld [smem:[#allocation0]]
  $region38: #{latex_init_decoder_fused.1} parent=0
    _
  %s6 = ssub.s32 1, %s4
  %s7 = scalar_select 0, %s6, %s4
  $region1: #{latex_init_decoder_fused.1} parent=0
    #allocation3 [shape = 'u8[65536]{0}', space=vmem, size = 0x10000, scoped, tag = 'input window, operand 0, single buffered']
    #allocation4 [shape = 's32[1]{0}', space=sflag, size = 0x4, scoped, tag = 'scoped memory for latex_init_decoder_fused.1']
    #allocation5 [shape = 'u8[786432]{0}', space=vmem, size = 0xc0000, scoped, tag = 'input window, operand 1, single buffered']
    #allocation6 [shape = 's32[1]{0}', space=sflag, size = 0x4, scoped, tag = 'scoped memory for latex_init_decoder_fused.1']
    %8 = vsyncpa [#allocation4], 0
    %9 = vsyncpa [#allocation6], 0
    // Predicated region
    $region2: #{latex_init_decoder_fused.1} parent=1 // pred_check
      _
    $region3: #{latex_init_decoder_fused.1} parent=1 // pred_check_branch
      %11 = sbr.rel (0) target = $region5
    $region4: #{latex_init_decoder_fused.1} parent=1 // pred_region
      %s13 = ssub.s32 2048, 2048
      %14 = vsyncadd [#allocation4], %s13
      %s15 = sshll.u32 [#allocation3], 4
      %s16 = int_to_ptr.vmem [resolvable:$true] %s15
      %21 = dma.hbm_to_vmem [thread:$0]  %s0, 2048, %s16, [#allocation4], 256, 256, 16
    $region5: #{latex_init_decoder_fused.1} parent=1 // pred_fallthru
      _
    // Predicated region
    $region6: #{latex_init_decoder_fused.1} parent=1 // pred_check
      _
    $region7: #{latex_init_decoder_fused.1} parent=1 // pred_check_branch
      %23 = sbr.rel (0) target = $region9
    $region8: #{latex_init_decoder_fused.1} parent=1 // pred_region
      %s25 = ssub.s32 24576, 24576
      %26 = vsyncadd [#allocation6], %s25
      %s27 = sshll.u32 [#allocation5], 4
      %s28 = int_to_ptr.vmem [resolvable:$true] %s27
      %33 = dma.hbm_to_vmem [thread:$0]  %s1, 24576, %s28, [#allocation6], 768, 768, 48
    $region9: #{latex_init_decoder_fused.1} parent=1 // pred_fallthru
      _
    // Predicated region
    $region10: #{latex_init_decoder_fused.1} parent=1 // pred_check
      _
    $region11: #{latex_init_decoder_fused.1} parent=1 // pred_check_branch
      %35 = sbr.rel (0) target = $region13
    $region12: #{latex_init_decoder_fused.1} parent=1 // pred_region
      _
    $region13: #{latex_init_decoder_fused.1} parent=1 // pred_fallthru
      _
    // Predicated region
    $region14: #{latex_init_decoder_fused.1} parent=1 // pred_check
      _
    $region15: #{latex_init_decoder_fused.1} parent=1 // pred_check_branch
      %37 = sbr.rel (0) target = $region17
    $region16: #{latex_init_decoder_fused.1} parent=1 // pred_region
      %38 = dma.done [#allocation4], 2048
    $region17: #{latex_init_decoder_fused.1} parent=1 // pred_fallthru
      _
    // Predicated region
    $region18: #{latex_init_decoder_fused.1} parent=1 // pred_check
      _
    $region19: #{latex_init_decoder_fused.1} parent=1 // pred_check_branch
      %40 = sbr.rel (0) target = $region21
    $region20: #{latex_init_decoder_fused.1} parent=1 // pred_region
      %41 = dma.done [#allocation6], 24576
    $region21: #{latex_init_decoder_fused.1} parent=1 // pred_fallthru
      _
    %p42 = scmp.eq.s32.totalorder 0, 0
    // Predicated region
    $region22: #{latex_init_decoder_fused.1} parent=1 // pred_check
      %p43 = pneg %p42
    $region23: #{latex_init_decoder_fused.1} parent=1 // pred_check_branch
      %45 = sbr.rel (%p43) target = $region25
    $region24: #{latex_init_decoder_fused.1} parent=1 // pred_region
      %46 = vst [vmem:[#allocation2] sm:$0xff] 0.0
      %47 = vst [vmem:[#allocation2 + $0x8] sm:$0xff] 0.0
    $region25: #{latex_init_decoder_fused.1} parent=1 // pred_fallthru
      _
    %v48 = vld [vmem:[#allocation2] sm:$0xff]
    %v49 = vld [vmem:[#allocation2 + $0x8] sm:$0xff]
    %v50 = vld [vmem:[#allocation3] sm:$0xff]
    %v51 = vld [vmem:[#allocation3 + $0x8] sm:$0xff]
    %v52 = vld [vmem:[#allocation3 + $0x10] sm:$0xff]
    %v53 = vld [vmem:[#allocation3 + $0x18] sm:$0xff]
    %v54 = vld [vmem:[#allocation3 + $0x20] sm:$0xff]
    %v55 = vld [vmem:[#allocation3 + $0x28] sm:$0xff]
    %v56 = vld [vmem:[#allocation3 + $0x30] sm:$0xff]
    %v57 = vld [vmem:[#allocation3 + $0x38] sm:$0xff]
    %v58 = vld [vmem:[#allocation3 + $0x40] sm:$0xff]
    %v59 = vld [vmem:[#allocation3 + $0x48] sm:$0xff]
    %v60 = vld [vmem:[#allocation3 + $0x50] sm:$0xff]
    %v61 = vld [vmem:[#allocation3 + $0x58] sm:$0xff]
    %v62 = vld [vmem:[#allocation3 + $0x60] sm:$0xff]
    %v63 = vld [vmem:[#allocation3 + $0x68] sm:$0xff]
    %v64 = vld [vmem:[#allocation3 + $0x70] sm:$0xff]
    %v65 = vld [vmem:[#allocation3 + $0x78] sm:$0xff]
    %v66 = vrot.slane %v50, 4
    %v67 = vadd.f32 %v50, %v66
    %v68 = vrot.slane %v67, 2
    %v69 = vadd.f32 %v67, %v68
    %v70 = vrot.slane %v69, 1
    %v71 = vadd.f32 %v69, %v70
    %v72 = vrot.slane %v51, 4
    %v73 = vadd.f32 %v51, %v72
    %v74 = vrot.slane %v73, 2
    %v75 = vadd.f32 %v73, %v74
    %v76 = vrot.slane %v75, 1
    %v77 = vadd.f32 %v75, %v76
    %v78 = vrot.slane %v52, 4
    %v79 = vadd.f32 %v52, %v78
    %v80 = vrot.slane %v79, 2
    %v81 = vadd.f32 %v79, %v80
    %v82 = vrot.slane %v81, 1
    %v83 = vadd.f32 %v81, %v82
    %v84 = vrot.slane %v53, 4
    %v85 = vadd.f32 %v53, %v84
    %v86 = vrot.slane %v85, 2
    %v87 = vadd.f32 %v85, %v86
    %v88 = vrot.slane %v87, 1
    %v89 = vadd.f32 %v87, %v88
    %v90 = vrot.slane %v54, 4
    %v91 = vadd.f32 %v54, %v90
    %v92 = vrot.slane %v91, 2
    %v93 = vadd.f32 %v91, %v92
    %v94 = vrot.slane %v93, 1
    %v95 = vadd.f32 %v93, %v94
    %v96 = vrot.slane %v55, 4
    %v97 = vadd.f32 %v55, %v96
    %v98 = vrot.slane %v97, 2
    %v99 = vadd.f32 %v97, %v98
    %v100 = vrot.slane %v99, 1
    %v101 = vadd.f32 %v99, %v100
    %v102 = vrot.slane %v56, 4
    %v103 = vadd.f32 %v56, %v102
    %v104 = vrot.slane %v103, 2
    %v105 = vadd.f32 %v103, %v104
    %v106 = vrot.slane %v105, 1
    %v107 = vadd.f32 %v105, %v106
    %v108 = vrot.slane %v57, 4
    %v109 = vadd.f32 %v57, %v108
    %v110 = vrot.slane %v109, 2
    %v111 = vadd.f32 %v109, %v110
    %v112 = vrot.slane %v111, 1
    %v113 = vadd.f32 %v111, %v112
    %v114 = vrot.slane %v58, 4
    %v115 = vadd.f32 %v58, %v114
    %v116 = vrot.slane %v115, 2
    %v117 = vadd.f32 %v115, %v116
    %v118 = vrot.slane %v117, 1
    %v119 = vadd.f32 %v117, %v118
    %v120 = vrot.slane %v59, 4
    %v121 = vadd.f32 %v59, %v120
    %v122 = vrot.slane %v121, 2
    %v123 = vadd.f32 %v121, %v122
    %v124 = vrot.slane %v123, 1
    %v125 = vadd.f32 %v123, %v124
    %v126 = vrot.slane %v60, 4
    %v127 = vadd.f32 %v60, %v126
    %v128 = vrot.slane %v127, 2
    %v129 = vadd.f32 %v127, %v128
    %v130 = vrot.slane %v129, 1
    %v131 = vadd.f32 %v129, %v130
    %v132 = vrot.slane %v61, 4
    %v133 = vadd.f32 %v61, %v132
    %v134 = vrot.slane %v133, 2
    %v135 = vadd.f32 %v133, %v134
    %v136 = vrot.slane %v135, 1
    %v137 = vadd.f32 %v135, %v136
    %v138 = vrot.slane %v62, 4
    %v139 = vadd.f32 %v62, %v138
    %v140 = vrot.slane %v139, 2
    %v141 = vadd.f32 %v139, %v140
    %v142 = vrot.slane %v141, 1
    %v143 = vadd.f32 %v141, %v142
    %v144 = vrot.slane %v63, 4
    %v145 = vadd.f32 %v63, %v144
    %v146 = vrot.slane %v145, 2
    %v147 = vadd.f32 %v145, %v146
    %v148 = vrot.slane %v147, 1
    %v149 = vadd.f32 %v147, %v148
    %v150 = vrot.slane %v64, 4
    %v151 = vadd.f32 %v64, %v150
    %v152 = vrot.slane %v151, 2
    %v153 = vadd.f32 %v151, %v152
    %v154 = vrot.slane %v153, 1
    %v155 = vadd.f32 %v153, %v154
    %v156 = vrot.slane %v65, 4
    %v157 = vadd.f32 %v65, %v156
    %v158 = vrot.slane %v157, 2
    %v159 = vadd.f32 %v157, %v158
    %v160 = vrot.slane %v159, 1
    %v161 = vadd.f32 %v159, %v160
    %vm178 = vcmask 1041409
    %v179 = vsel %vm178, %v83, %v71
    %vm180 = vcmask 1042434
    %v181 = vsel %vm180, %v95, %v179
    %vm182 = vcmask 1043459
    %v183 = vsel %vm182, %v107, %v181
    %vm184 = vcmask 1044484
    %v185 = vsel %vm184, %v119, %v183
    %vm186 = vcmask 1045509
    %v187 = vsel %vm186, %v131, %v185
    %vm188 = vcmask 1046534
    %v189 = vsel %vm188, %v143, %v187
    %vm190 = vcmask 1047559
    %v191 = vsel %vm190, %v155, %v189
    %v192 = vsel %vm178, %v89, %v77
    %v193 = vsel %vm180, %v101, %v192
    %v194 = vsel %vm182, %v113, %v193
    %v195 = vsel %vm184, %v125, %v194
    %v196 = vsel %vm186, %v137, %v195
    %v197 = vsel %vm188, %v149, %v196
    %v198 = vsel %vm190, %v161, %v197
    %v201 = vadd.f32 %v48, %v191
    %v202 = vadd.f32 %v49, %v198
    %203 = vst [vmem:[#allocation2] sm:$0xff] %v201
    %204 = vst [vmem:[#allocation2 + $0x8] sm:$0xff] %v202
    // Predicated region
    $region26: #{latex_init_decoder_fused.1} parent=1 // pred_check
      %p205 = pneg %p42
    $region27: #{latex_init_decoder_fused.1} parent=1 // pred_check_branch
      %207 = sbr.rel (%p205) target = $region29
    $region28: #{latex_init_decoder_fused.1} parent=1 // pred_region
      %v208 = vld [vmem:[#allocation2] sm:$0xff]
      %v209 = vld [vmem:[#allocation2 + $0x8] sm:$0xff]
      %v210 = vmul.f32 %v208, 0.125
      %v211 = vmul.f32 %v209, 0.125
      %v212 = vld [vmem:[#allocation5] sm:$0xff]
      %v213 = vld [vmem:[#allocation5 + $0x8] sm:$0xff]
      %v214 = vld [vmem:[#allocation5 + $0x10] sm:$0xff]
      %v215 = vld [vmem:[#allocation5 + $0x18] sm:$0xff]
      %v216 = vld [vmem:[#allocation5 + $0x20] sm:$0xff]
      %v217 = vld [vmem:[#allocation5 + $0x28] sm:$0xff]
      %v218 = vld [vmem:[#allocation5 + $0x30] sm:$0xff]
      %v219 = vld [vmem:[#allocation5 + $0x38] sm:$0xff]
      %v220 = vld [vmem:[#allocation5 + $0x40] sm:$0xff]
      %v221 = vld [vmem:[#allocation5 + $0x48] sm:$0xff]
      %v222 = vld [vmem:[#allocation5 + $0x50] sm:$0xff]
      %v223 = vld [vmem:[#allocation5 + $0x58] sm:$0xff]
      %v224 = vld [vmem:[#allocation5 + $0x60] sm:$0xff]
      %v225 = vld [vmem:[#allocation5 + $0x68] sm:$0xff]
      %v226 = vld [vmem:[#allocation5 + $0x70] sm:$0xff]
      %v227 = vld [vmem:[#allocation5 + $0x78] sm:$0xff]
      %v228 = vld [vmem:[#allocation5 + $0x80] sm:$0xff]
      %v229 = vld [vmem:[#allocation5 + $0x88] sm:$0xff]
      %v230 = vld [vmem:[#allocation5 + $0x90] sm:$0xff]
      %v231 = vld [vmem:[#allocation5 + $0x98] sm:$0xff]
      %v232 = vld [vmem:[#allocation5 + $0xa0] sm:$0xff]
      %v233 = vld [vmem:[#allocation5 + $0xa8] sm:$0xff]
      %v234 = vld [vmem:[#allocation5 + $0xb0] sm:$0xff]
      %v235 = vld [vmem:[#allocation5 + $0xb8] sm:$0xff]
      %v236 = vld [vmem:[#allocation5 + $0xc0] sm:$0xff]
      %v237 = vld [vmem:[#allocation5 + $0xc8] sm:$0xff]
      %v238 = vld [vmem:[#allocation5 + $0xd0] sm:$0xff]
      %v239 = vld [vmem:[#allocation5 + $0xd8] sm:$0xff]
      %v240 = vld [vmem:[#allocation5 + $0xe0] sm:$0xff]
      %v241 = vld [vmem:[#allocation5 + $0xe8] sm:$0xff]
      %v242 = vld [vmem:[#allocation5 + $0xf0] sm:$0xff]
      %v243 = vld [vmem:[#allocation5 + $0xf8] sm:$0xff]
      %v244 = vld [vmem:[#allocation5 + $0x100] sm:$0xff]
      %v245 = vld [vmem:[#allocation5 + $0x108] sm:$0xff]
      %v246 = vld [vmem:[#allocation5 + $0x110] sm:$0xff]
      %v247 = vld [vmem:[#allocation5 + $0x118] sm:$0xff]
      %v248 = vld [vmem:[#allocation5 + $0x120] sm:$0xff]
      %v249 = vld [vmem:[#allocation5 + $0x128] sm:$0xff]
      %v250 = vld [vmem:[#allocation5 + $0x130] sm:$0xff]
      %v251 = vld [vmem:[#allocation5 + $0x138] sm:$0xff]
      %v252 = vld [vmem:[#allocation5 + $0x140] sm:$0xff]
      %v253 = vld [vmem:[#allocation5 + $0x148] sm:$0xff]
      %v254 = vld [vmem:[#allocation5 + $0x150] sm:$0xff]
      %v255 = vld [vmem:[#allocation5 + $0x158] sm:$0xff]
      %v256 = vld [vmem:[#allocation5 + $0x160] sm:$0xff]
      %v257 = vld [vmem:[#allocation5 + $0x168] sm:$0xff]
      %v258 = vld [vmem:[#allocation5 + $0x170] sm:$0xff]
      %v259 = vld [vmem:[#allocation5 + $0x178] sm:$0xff]
      %v260 = vld [vmem:[#allocation5 + $0x180] sm:$0xff]
      %v261 = vld [vmem:[#allocation5 + $0x188] sm:$0xff]
      %v262 = vld [vmem:[#allocation5 + $0x190] sm:$0xff]
      %v263 = vld [vmem:[#allocation5 + $0x198] sm:$0xff]
      %v264 = vld [vmem:[#allocation5 + $0x1a0] sm:$0xff]
      %v265 = vld [vmem:[#allocation5 + $0x1a8] sm:$0xff]
      %v266 = vld [vmem:[#allocation5 + $0x1b0] sm:$0xff]
      %v267 = vld [vmem:[#allocation5 + $0x1b8] sm:$0xff]
      %v268 = vld [vmem:[#allocation5 + $0x1c0] sm:$0xff]
      %v269 = vld [vmem:[#allocation5 + $0x1c8] sm:$0xff]
      %v270 = vld [vmem:[#allocation5 + $0x1d0] sm:$0xff]
      %v271 = vld [vmem:[#allocation5 + $0x1d8] sm:$0xff]
      %v272 = vld [vmem:[#allocation5 + $0x1e0] sm:$0xff]
      %v273 = vld [vmem:[#allocation5 + $0x1e8] sm:$0xff]
      %v274 = vld [vmem:[#allocation5 + $0x1f0] sm:$0xff]
      %v275 = vld [vmem:[#allocation5 + $0x1f8] sm:$0xff]
      %v276 = vld [vmem:[#allocation5 + $0x200] sm:$0xff]
      %v277 = vld [vmem:[#allocation5 + $0x208] sm:$0xff]
      %v278 = vld [vmem:[#allocation5 + $0x210] sm:$0xff]
      %v279 = vld [vmem:[#allocation5 + $0x218] sm:$0xff]
      %v280 = vld [vmem:[#allocation5 + $0x220] sm:$0xff]
      %v281 = vld [vmem:[#allocation5 + $0x228] sm:$0xff]
      %v282 = vld [vmem:[#allocation5 + $0x230] sm:$0xff]
      %v283 = vld [vmem:[#allocation5 + $0x238] sm:$0xff]
      %v284 = vld [vmem:[#allocation5 + $0x240] sm:$0xff]
      %v285 = vld [vmem:[#allocation5 + $0x248] sm:$0xff]
      %v286 = vld [vmem:[#allocation5 + $0x250] sm:$0xff]
      %v287 = vld [vmem:[#allocation5 + $0x258] sm:$0xff]
      %v288 = vld [vmem:[#allocation5 + $0x260] sm:$0xff]
      %v289 = vld [vmem:[#allocation5 + $0x268] sm:$0xff]
      %v290 = vld [vmem:[#allocation5 + $0x270] sm:$0xff]
      %v291 = vld [vmem:[#allocation5 + $0x278] sm:$0xff]
      %v292 = vld [vmem:[#allocation5 + $0x280] sm:$0xff]
      %v293 = vld [vmem:[#allocation5 + $0x288] sm:$0xff]
      %v294 = vld [vmem:[#allocation5 + $0x290] sm:$0xff]
      %v295 = vld [vmem:[#allocation5 + $0x298] sm:$0xff]
      %v296 = vld [vmem:[#allocation5 + $0x2a0] sm:$0xff]
      %v297 = vld [vmem:[#allocation5 + $0x2a8] sm:$0xff]
      %v298 = vld [vmem:[#allocation5 + $0x2b0] sm:$0xff]
      %v299 = vld [vmem:[#allocation5 + $0x2b8] sm:$0xff]
      %v300 = vld [vmem:[#allocation5 + $0x2c0] sm:$0xff]
      %v301 = vld [vmem:[#allocation5 + $0x2c8] sm:$0xff]
      %v302 = vld [vmem:[#allocation5 + $0x2d0] sm:$0xff]
      %v303 = vld [vmem:[#allocation5 + $0x2d8] sm:$0xff]
      %v304 = vld [vmem:[#allocation5 + $0x2e0] sm:$0xff]
      %v305 = vld [vmem:[#allocation5 + $0x2e8] sm:$0xff]
      %v306 = vld [vmem:[#allocation5 + $0x2f0] sm:$0xff]
      %v307 = vld [vmem:[#allocation5 + $0x2f8] sm:$0xff]
      %v308 = vld [vmem:[#allocation5 + $0x300] sm:$0xff]
      %v309 = vld [vmem:[#allocation5 + $0x308] sm:$0xff]
      %v310 = vld [vmem:[#allocation5 + $0x310] sm:$0xff]
      %v311 = vld [vmem:[#allocation5 + $0x318] sm:$0xff]
      %v312 = vld [vmem:[#allocation5 + $0x320] sm:$0xff]
      %v313 = vld [vmem:[#allocation5 + $0x328] sm:$0xff]
      %v314 = vld [vmem:[#allocation5 + $0x330] sm:$0xff]
      %v315 = vld [vmem:[#allocation5 + $0x338] sm:$0xff]
      %v316 = vld [vmem:[#allocation5 + $0x340] sm:$0xff]
      %v317 = vld [vmem:[#allocation5 + $0x348] sm:$0xff]
      %v318 = vld [vmem:[#allocation5 + $0x350] sm:$0xff]
      %v319 = vld [vmem:[#allocation5 + $0x358] sm:$0xff]
      %v320 = vld [vmem:[#allocation5 + $0x360] sm:$0xff]
      %v321 = vld [vmem:[#allocation5 + $0x368] sm:$0xff]
      %v322 = vld [vmem:[#allocation5 + $0x370] sm:$0xff]
      %v323 = vld [vmem:[#allocation5 + $0x378] sm:$0xff]
      %v324 = vld [vmem:[#allocation5 + $0x380] sm:$0xff]
      %v325 = vld [vmem:[#allocation5 + $0x388] sm:$0xff]
      %v326 = vld [vmem:[#allocation5 + $0x390] sm:$0xff]
      %v327 = vld [vmem:[#allocation5 + $0x398] sm:$0xff]
      %v328 = vld [vmem:[#allocation5 + $0x3a0] sm:$0xff]
      %v329 = vld [vmem:[#allocation5 + $0x3a8] sm:$0xff]
      %v330 = vld [vmem:[#allocation5 + $0x3b0] sm:$0xff]
      %v331 = vld [vmem:[#allocation5 + $0x3b8] sm:$0xff]
      %v332 = vld [vmem:[#allocation5 + $0x3c0] sm:$0xff]
      %v333 = vld [vmem:[#allocation5 + $0x3c8] sm:$0xff]
      %v334 = vld [vmem:[#allocation5 + $0x3d0] sm:$0xff]
      %v335 = vld [vmem:[#allocation5 + $0x3d8] sm:$0xff]
      %v336 = vld [vmem:[#allocation5 + $0x3e0] sm:$0xff]
      %v337 = vld [vmem:[#allocation5 + $0x3e8] sm:$0xff]
      %v338 = vld [vmem:[#allocation5 + $0x3f0] sm:$0xff]
      %v339 = vld [vmem:[#allocation5 + $0x3f8] sm:$0xff]
      %v340 = vld [vmem:[#allocation5 + $0x400] sm:$0xff]
      %v341 = vld [vmem:[#allocation5 + $0x408] sm:$0xff]
      %v342 = vld [vmem:[#allocation5 + $0x410] sm:$0xff]
      %v343 = vld [vmem:[#allocation5 + $0x418] sm:$0xff]
      %v344 = vld [vmem:[#allocation5 + $0x420] sm:$0xff]
      %v345 = vld [vmem:[#allocation5 + $0x428] sm:$0xff]
      %v346 = vld [vmem:[#allocation5 + $0x430] sm:$0xff]
      %v347 = vld [vmem:[#allocation5 + $0x438] sm:$0xff]
      %v348 = vld [vmem:[#allocation5 + $0x440] sm:$0xff]
      %v349 = vld [vmem:[#allocation5 + $0x448] sm:$0xff]
      %v350 = vld [vmem:[#allocation5 + $0x450] sm:$0xff]
      %v351 = vld [vmem:[#allocation5 + $0x458] sm:$0xff]
      %v352 = vld [vmem:[#allocation5 + $0x460] sm:$0xff]
      %v353 = vld [vmem:[#allocation5 + $0x468] sm:$0xff]
      %v354 = vld [vmem:[#allocation5 + $0x470] sm:$0xff]
      %v355 = vld [vmem:[#allocation5 + $0x478] sm:$0xff]
      %v356 = vld [vmem:[#allocation5 + $0x480] sm:$0xff]
      %v357 = vld [vmem:[#allocation5 + $0x488] sm:$0xff]
      %v358 = vld [vmem:[#allocation5 + $0x490] sm:$0xff]
      %v359 = vld [vmem:[#allocation5 + $0x498] sm:$0xff]
      %v360 = vld [vmem:[#allocation5 + $0x4a0] sm:$0xff]
      %v361 = vld [vmem:[#allocation5 + $0x4a8] sm:$0xff]
      %v362 = vld [vmem:[#allocation5 + $0x4b0] sm:$0xff]
      %v363 = vld [vmem:[#allocation5 + $0x4b8] sm:$0xff]
      %v364 = vld [vmem:[#allocation5 + $0x4c0] sm:$0xff]
      %v365 = vld [vmem:[#allocation5 + $0x4c8] sm:$0xff]
      %v366 = vld [vmem:[#allocation5 + $0x4d0] sm:$0xff]
      %v367 = vld [vmem:[#allocation5 + $0x4d8] sm:$0xff]
      %v368 = vld [vmem:[#allocation5 + $0x4e0] sm:$0xff]
      %v369 = vld [vmem:[#allocation5 + $0x4e8] sm:$0xff]
      %v370 = vld [vmem:[#allocation5 + $0x4f0] sm:$0xff]
      %v371 = vld [vmem:[#allocation5 + $0x4f8] sm:$0xff]
      %v372 = vld [vmem:[#allocation5 + $0x500] sm:$0xff]
      %v373 = vld [vmem:[#allocation5 + $0x508] sm:$0xff]
      %v374 = vld [vmem:[#allocation5 + $0x510] sm:$0xff]
      %v375 = vld [vmem:[#allocation5 + $0x518] sm:$0xff]
      %v376 = vld [vmem:[#allocation5 + $0x520] sm:$0xff]
      %v377 = vld [vmem:[#allocation5 + $0x528] sm:$0xff]
      %v378 = vld [vmem:[#allocation5 + $0x530] sm:$0xff]
      %v379 = vld [vmem:[#allocation5 + $0x538] sm:$0xff]
      %v380 = vld [vmem:[#allocation5 + $0x540] sm:$0xff]
      %v381 = vld [vmem:[#allocation5 + $0x548] sm:$0xff]
      %v382 = vld [vmem:[#allocation5 + $0x550] sm:$0xff]
      %v383 = vld [vmem:[#allocation5 + $0x558] sm:$0xff]
      %v384 = vld [vmem:[#allocation5 + $0x560] sm:$0xff]
      %v385 = vld [vmem:[#allocation5 + $0x568] sm:$0xff]
      %v386 = vld [vmem:[#allocation5 + $0x570] sm:$0xff]
      %v387 = vld [vmem:[#allocation5 + $0x578] sm:$0xff]
      %v388 = vld [vmem:[#allocation5 + $0x580] sm:$0xff]
      %v389 = vld [vmem:[#allocation5 + $0x588] sm:$0xff]
      %v390 = vld [vmem:[#allocation5 + $0x590] sm:$0xff]
      %v391 = vld [vmem:[#allocation5 + $0x598] sm:$0xff]
      %v392 = vld [vmem:[#allocation5 + $0x5a0] sm:$0xff]
      %v393 = vld [vmem:[#allocation5 + $0x5a8] sm:$0xff]
      %v394 = vld [vmem:[#allocation5 + $0x5b0] sm:$0xff]
      %v395 = vld [vmem:[#allocation5 + $0x5b8] sm:$0xff]
      %v396 = vld [vmem:[#allocation5 + $0x5c0] sm:$0xff]
      %v397 = vld [vmem:[#allocation5 + $0x5c8] sm:$0xff]
      %v398 = vld [vmem:[#allocation5 + $0x5d0] sm:$0xff]
      %v399 = vld [vmem:[#allocation5 + $0x5d8] sm:$0xff]
      %v400 = vld [vmem:[#allocation5 + $0x5e0] sm:$0xff]
      %v401 = vld [vmem:[#allocation5 + $0x5e8] sm:$0xff]
      %v402 = vld [vmem:[#allocation5 + $0x5f0] sm:$0xff]
      %v403 = vld [vmem:[#allocation5 + $0x5f8] sm:$0xff]
      %v404 = vld [vmem:[%s2] sm:$0x3f]
      %v406 = vlaneseq
      %v407 = vshrl.u32 %v406, 7
      %v408 = vsub.s32 0, %v407
      %v409 = vrot.slane %v404, %v408
      %v410 = vlaneseq
      %v411 = vshrl.u32 %v410, 7
      %v412 = vsub.s32 1, %v411
      %v413 = vrot.slane %v404, %v412
      %v414 = vlaneseq
      %v415 = vshrl.u32 %v414, 7
      %v416 = vsub.s32 2, %v415
      %v417 = vrot.slane %v404, %v416
      %v418 = vlaneseq
      %v419 = vshrl.u32 %v418, 7
      %v420 = vsub.s32 3, %v419
      %v421 = vrot.slane %v404, %v420
      %v422 = vlaneseq
      %v423 = vshrl.u32 %v422, 7
      %v424 = vsub.s32 4, %v423
      %v425 = vrot.slane %v404, %v424
      %v426 = vlaneseq
      %v427 = vshrl.u32 %v426, 7
      %v428 = vsub.s32 5, %v427
      %v429 = vrot.slane %v404, %v428
      %436 = vmatprep.subr.mxu0 %v213
      %437 = vmatpush1.msra.mxu0 %v212
      %438 = vmatprep.subr.mxu0 %v219
      %439 = vmatpush1.msra.mxu0 %v218
      %440 = vmatprep.subr.mxu0 %v225
      %441 = vmatpush1.msra.mxu0 %v224
      %442 = vmatprep.subr.mxu0 %v231
      %443 = vmatpush1.msra.mxu0 %v230
      %444 = vmatprep.subr.mxu0 %v237
      %445 = vmatpush1.msra.mxu0 %v236
      %446 = vmatprep.subr.mxu0 %v243
      %447 = vmatpush1.msra.mxu0 %v242
      %448 = vmatprep.subr.mxu0 %v249
      %449 = vmatpush1.msra.mxu0 %v248
      %450 = vmatprep.subr.mxu0 %v255
      %451 = vmatpush1.msra.mxu0 %v254
      %452 = vmatprep.subr.mxu0 %v261
      %453 = vmatpush1.msra.mxu0 %v260
      %454 = vmatprep.subr.mxu0 %v267
      %455 = vmatpush1.msra.mxu0 %v266
      %456 = vmatprep.subr.mxu0 %v273
      %457 = vmatpush1.msra.mxu0 %v272
      %458 = vmatprep.subr.mxu0 %v279
      %459 = vmatpush1.msra.mxu0 %v278
      %460 = vmatprep.subr.mxu0 %v285
      %461 = vmatpush1.msra.mxu0 %v284
      %462 = vmatprep.subr.mxu0 %v291
      %463 = vmatpush1.msra.mxu0 %v290
      %464 = vmatprep.subr.mxu0 %v297
      %465 = vmatpush1.msra.mxu0 %v296
      %466 = vmatprep.subr.mxu0 %v303
      %467 = vmatpush1.msra.mxu0 %v302
      %468 = vmatprep.subr.mxu0 %v309
      %469 = vmatpush1.msra.mxu0 %v308
      %470 = vmatprep.subr.mxu0 %v315
      %471 = vmatpush1.msra.mxu0 %v314
      %472 = vmatprep.subr.mxu0 %v321
      %473 = vmatpush1.msra.mxu0 %v320
      %474 = vmatprep.subr.mxu0 %v327
      %475 = vmatpush1.msra.mxu0 %v326
      %476 = vmatprep.subr.mxu0 %v333
      %477 = vmatpush1.msra.mxu0 %v332
      %478 = vmatprep.subr.mxu0 %v339
      %479 = vmatpush1.msra.mxu0 %v338
      %480 = vmatprep.subr.mxu0 %v345
      %481 = vmatpush1.msra.mxu0 %v344
      %482 = vmatprep.subr.mxu0 %v351
      %483 = vmatpush1.msra.mxu0 %v350
      %484 = vmatprep.subr.mxu0 %v357
      %485 = vmatpush1.msra.mxu0 %v356
      %486 = vmatprep.subr.mxu0 %v363
      %487 = vmatpush1.msra.mxu0 %v362
      %488 = vmatprep.subr.mxu0 %v369
      %489 = vmatpush1.msra.mxu0 %v368
      %490 = vmatprep.subr.mxu0 %v375
      %491 = vmatpush1.msra.mxu0 %v374
      %492 = vmatprep.subr.mxu0 %v381
      %493 = vmatpush1.msra.mxu0 %v380
      %494 = vmatprep.subr.mxu0 %v387
      %495 = vmatpush1.msra.mxu0 %v386
      %496 = vmatprep.subr.mxu0 %v393
      %497 = vmatpush1.msra.mxu0 %v392
      %498 = vmatprep.subr.mxu0 %v399
      %499 = vmatpush1.msra.mxu0 %v398
      %500 = vmatprep.mubr.f32.mxu0 %v211
      %501 = vmatmul.mubr.f32.gmra.mrb[0].mxu0 %v210
      %v502 = vpop.f32.mrb[0].mxu0
      %v503 = vadd.f32 %v409, %v502
      %v504 = vpop.f32.mrb[0].mxu0
      %v505 = vadd.f32 %v413, %v504
      %506 = vdwg.mxu0
      %507 = vmatprep.subr.mxu0 %v215
      %508 = vmatpush1.msra.mxu0 %v214
      %509 = vmatprep.subr.mxu0 %v221
      %510 = vmatpush1.msra.mxu0 %v220
      %511 = vmatprep.subr.mxu0 %v227
      %512 = vmatpush1.msra.mxu0 %v226
      %513 = vmatprep.subr.mxu0 %v233
      %514 = vmatpush1.msra.mxu0 %v232
      %515 = vmatprep.subr.mxu0 %v239
      %516 = vmatpush1.msra.mxu0 %v238
      %517 = vmatprep.subr.mxu0 %v245
      %518 = vmatpush1.msra.mxu0 %v244
      %519 = vmatprep.subr.mxu0 %v251
      %520 = vmatpush1.msra.mxu0 %v250
      %521 = vmatprep.subr.mxu0 %v257
      %522 = vmatpush1.msra.mxu0 %v256
      %523 = vmatprep.subr.mxu0 %v263
      %524 = vmatpush1.msra.mxu0 %v262
      %525 = vmatprep.subr.mxu0 %v269
      %526 = vmatpush1.msra.mxu0 %v268
      %527 = vmatprep.subr.mxu0 %v275
      %528 = vmatpush1.msra.mxu0 %v274
      %529 = vmatprep.subr.mxu0 %v281
      %530 = vmatpush1.msra.mxu0 %v280
      %531 = vmatprep.subr.mxu0 %v287
      %532 = vmatpush1.msra.mxu0 %v286
      %533 = vmatprep.subr.mxu0 %v293
      %534 = vmatpush1.msra.mxu0 %v292
      %535 = vmatprep.subr.mxu0 %v299
      %536 = vmatpush1.msra.mxu0 %v298
      %537 = vmatprep.subr.mxu0 %v305
      %538 = vmatpush1.msra.mxu0 %v304
      %539 = vmatprep.subr.mxu0 %v311
      %540 = vmatpush1.msra.mxu0 %v310
      %541 = vmatprep.subr.mxu0 %v317
      %542 = vmatpush1.msra.mxu0 %v316
      %543 = vmatprep.subr.mxu0 %v323
      %544 = vmatpush1.msra.mxu0 %v322
      %545 = vmatprep.subr.mxu0 %v329
      %546 = vmatpush1.msra.mxu0 %v328
      %547 = vmatprep.subr.mxu0 %v335
      %548 = vmatpush1.msra.mxu0 %v334
      %549 = vmatprep.subr.mxu0 %v341
      %550 = vmatpush1.msra.mxu0 %v340
      %551 = vmatprep.subr.mxu0 %v347
      %552 = vmatpush1.msra.mxu0 %v346
      %553 = vmatprep.subr.mxu0 %v353
      %554 = vmatpush1.msra.mxu0 %v352
      %555 = vmatprep.subr.mxu0 %v359
      %556 = vmatpush1.msra.mxu0 %v358
      %557 = vmatprep.subr.mxu0 %v365
      %558 = vmatpush1.msra.mxu0 %v364
      %559 = vmatprep.subr.mxu0 %v371
      %560 = vmatpush1.msra.mxu0 %v370
      %561 = vmatprep.subr.mxu0 %v377
      %562 = vmatpush1.msra.mxu0 %v376
      %563 = vmatprep.subr.mxu0 %v383
      %564 = vmatpush1.msra.mxu0 %v382
      %565 = vmatprep.subr.mxu0 %v389
      %566 = vmatpush1.msra.mxu0 %v388
      %567 = vmatprep.subr.mxu0 %v395
      %568 = vmatpush1.msra.mxu0 %v394
      %569 = vmatprep.subr.mxu0 %v401
      %570 = vmatpush1.msra.mxu0 %v400
      %571 = vmatprep.mubr.f32.mxu0 %v211
      %572 = vmatmul.mubr.f32.gmra.mrb[0].mxu0 %v210
      %v573 = vpop.f32.mrb[0].mxu0
      %v574 = vadd.f32 %v417, %v573
      %v575 = vpop.f32.mrb[0].mxu0
      %v576 = vadd.f32 %v421, %v575
      %577 = vdwg.mxu0
      %578 = vmatprep.subr.mxu0 %v217
      %579 = vmatpush1.msra.mxu0 %v216
      %580 = vmatprep.subr.mxu0 %v223
      %581 = vmatpush1.msra.mxu0 %v222
      %582 = vmatprep.subr.mxu0 %v229
      %583 = vmatpush1.msra.mxu0 %v228
      %584 = vmatprep.subr.mxu0 %v235
      %585 = vmatpush1.msra.mxu0 %v234
      %586 = vmatprep.subr.mxu0 %v241
      %587 = vmatpush1.msra.mxu0 %v240
      %588 = vmatprep.subr.mxu0 %v247
      %589 = vmatpush1.msra.mxu0 %v246
      %590 = vmatprep.subr.mxu0 %v253
      %591 = vmatpush1.msra.mxu0 %v252
      %592 = vmatprep.subr.mxu0 %v259
      %593 = vmatpush1.msra.mxu0 %v258
      %594 = vmatprep.subr.mxu0 %v265
      %595 = vmatpush1.msra.mxu0 %v264
      %596 = vmatprep.subr.mxu0 %v271
      %597 = vmatpush1.msra.mxu0 %v270
      %598 = vmatprep.subr.mxu0 %v277
      %599 = vmatpush1.msra.mxu0 %v276
      %600 = vmatprep.subr.mxu0 %v283
      %601 = vmatpush1.msra.mxu0 %v282
      %602 = vmatprep.subr.mxu0 %v289
      %603 = vmatpush1.msra.mxu0 %v288
      %604 = vmatprep.subr.mxu0 %v295
      %605 = vmatpush1.msra.mxu0 %v294
      %606 = vmatprep.subr.mxu0 %v301
      %607 = vmatpush1.msra.mxu0 %v300
      %608 = vmatprep.subr.mxu0 %v307
      %609 = vmatpush1.msra.mxu0 %v306
      %610 = vmatprep.subr.mxu0 %v313
      %611 = vmatpush1.msra.mxu0 %v312
      %612 = vmatprep.subr.mxu0 %v319
      %613 = vmatpush1.msra.mxu0 %v318
      %614 = vmatprep.subr.mxu0 %v325
      %615 = vmatpush1.msra.mxu0 %v324
      %616 = vmatprep.subr.mxu0 %v331
      %617 = vmatpush1.msra.mxu0 %v330
      %618 = vmatprep.subr.mxu0 %v337
      %619 = vmatpush1.msra.mxu0 %v336
      %620 = vmatprep.subr.mxu0 %v343
      %621 = vmatpush1.msra.mxu0 %v342
      %622 = vmatprep.subr.mxu0 %v349
      %623 = vmatpush1.msra.mxu0 %v348
      %624 = vmatprep.subr.mxu0 %v355
      %625 = vmatpush1.msra.mxu0 %v354
      %626 = vmatprep.subr.mxu0 %v361
      %627 = vmatpush1.msra.mxu0 %v360
      %628 = vmatprep.subr.mxu0 %v367
      %629 = vmatpush1.msra.mxu0 %v366
      %630 = vmatprep.subr.mxu0 %v373
      %631 = vmatpush1.msra.mxu0 %v372
      %632 = vmatprep.subr.mxu0 %v379
      %633 = vmatpush1.msra.mxu0 %v378
      %634 = vmatprep.subr.mxu0 %v385
      %635 = vmatpush1.msra.mxu0 %v384
      %636 = vmatprep.subr.mxu0 %v391
      %637 = vmatpush1.msra.mxu0 %v390
      %638 = vmatprep.subr.mxu0 %v397
      %639 = vmatpush1.msra.mxu0 %v396
      %640 = vmatprep.subr.mxu0 %v403
      %641 = vmatpush1.msra.mxu0 %v402
      %642 = vmatprep.mubr.f32.mxu0 %v211
      %643 = vmatmul.mubr.f32.gmra.mrb[0].mxu0 %v210
      %v644 = vpop.f32.mrb[0].mxu0
      %v645 = vadd.f32 %v425, %v644
      %v646 = vpop.f32.mrb[0].mxu0
      %v647 = vadd.f32 %v429, %v646
      %648 = vdwg.mxu0
      %v649 = vtanh.pop %v503
      %v650 = vtanh.pop %v505
      %v651 = vtanh.pop %v574
      %v652 = vtanh.pop %v576
      %v653 = vtanh.pop %v645
      %v654 = vtanh.pop %v647
      %655 = vst [vmem:[%s3] sm:$0xff] %v649
      %656 = vst [vmem:[%s3 + $0x8] sm:$0xff] %v650
      %657 = vst [vmem:[%s3 + $0x10] sm:$0xff] %v651
      %658 = vst [vmem:[%s3 + $0x18] sm:$0xff] %v652
      %659 = vst [vmem:[%s3 + $0x20] sm:$0xff] %v653
      %660 = vst [vmem:[%s3 + $0x28] sm:$0xff] %v654
    $region29: #{latex_init_decoder_fused.1} parent=1 // pred_fallthru
      _
    // Predicated region
    $region30: #{latex_init_decoder_fused.1} parent=1 // pred_check
      _
    $region31: #{latex_init_decoder_fused.1} parent=1 // pred_check_branch
      %662 = sbr.rel (0) target = $region33
    $region32: #{latex_init_decoder_fused.1} parent=1 // pred_region
      _
    $region33: #{latex_init_decoder_fused.1} parent=1 // pred_fallthru
      _
    // Predicated region
    $region34: #{latex_init_decoder_fused.1} parent=1 // pred_check
      _
    $region35: #{latex_init_decoder_fused.1} parent=1 // pred_check_branch
      %664 = sbr.rel (0) target = $region37
    $region36: #{latex_init_decoder_fused.1} parent=1 // pred_region
      _
    $region37: #{latex_init_decoder_fused.1} parent=1 // pred_fallthru
      _
    %665 = vsyncpa [#allocation4], 1
    %666 = vsyncpa [#allocation6], 1

</llo_original>
